<compile_context>
chip_gen: v7x
topology: tpu7x:2x2x1
jax: 0.10.0
libtpu: 0.0.40
codegen_flags: <defaults>
</compile_context>

<pallas_src>
import jax
import jax.numpy as jnp
from jax.experimental import pallas as pl
from jax.experimental.pallas import tpu as pltpu


# ----------------------------- Pallas kernel -------------------------------
def gcn_kernel(a_ref, x_ref, w1_ref, b1_ref, w2_ref, b2_ref, out_ref, acc_ref):
    """Grid = (row tiles of Â [parallel], source-node tiles [arbitrary/reduction])."""
    k = pl.program_id(1)

    @pl.when(k == 0)
    def _init():
        acc_ref[...] = jnp.zeros_like(acc_ref)

    # X_tile · W1   (f32 MXU), then cast to bf16 for the aggregation matmul.
    xw = jnp.dot(x_ref[...], w1_ref[...], preferred_element_type=jnp.float32)
    # Â_tile (bf16) · XW_tile (bf16)  -> f32 accumulator.
    acc_ref[...] += jnp.dot(
        a_ref[...], xw.astype(jnp.bfloat16), preferred_element_type=jnp.float32
    )

    @pl.when(k == pl.num_programs(1) - 1)
    def _finalize():
        h = acc_ref[...] + b1_ref[...]                      # GCNConv bias
        out = jnp.dot(h, w2_ref[...],
                      preferred_element_type=jnp.float32) + b2_ref[...]
        out_ref[...] = out.astype(out_ref.dtype)


def gcn_forward_pallas(a_hat_bf16, x, w1, b1, w2, b2, *, tm=128, tk=128):
    """Full GCN forward: OUT = (Â (X W1) + b1) W2 + b2, tiled over nodes."""
    N, nfeat = x.shape
    nhid = w1.shape[1]
    nclass = w2.shape[1]
    assert N % tm == 0 and N % tk == 0, "N must be divisible by the tile sizes"

    # Lane-dense output: pad class dim (and W2 / b2 columns) to a multiple of 128.
    padded_c = max(128, ((nclass + 127) // 128) * 128)
    w2p = jnp.zeros((nhid, padded_c), jnp.float32).at[:, :nclass].set(w2)
    b2p = jnp.zeros((1, padded_c), jnp.float32).at[:, :nclass].set(b2)

    grid = (N // tm, N // tk)

    out_padded = pl.pallas_call(
        gcn_kernel,
        out_shape=jax.ShapeDtypeStruct((N, padded_c), jnp.float32),
        grid_spec=pltpu.PrefetchScalarGridSpec(
            num_scalar_prefetch=0,
            grid=grid,
            in_specs=[
                # Â tile: (TM, TK) rows x source nodes, bf16.
                pl.BlockSpec((tm, tk), lambda i, k: (i, k)),
                # X tile: (TK, nfeat) — depends only on the reduction index.
                pl.BlockSpec((tk, nfeat), lambda i, k: (k, 0)),
                # Weights / biases: grid-invariant, stay VMEM resident.
                pl.BlockSpec((nfeat, nhid), lambda i, k: (0, 0)),
                pl.BlockSpec((1, nhid), lambda i, k: (0, 0)),
                pl.BlockSpec((nhid, padded_c), lambda i, k: (0, 0)),
                pl.BlockSpec((1, padded_c), lambda i, k: (0, 0)),
            ],
            out_specs=pl.BlockSpec((tm, padded_c), lambda i, k: (i, 0)),
            scratch_shapes=[pltpu.VMEM((tm, nhid), jnp.float32)],
        ),
        compiler_params=pltpu.CompilerParams(
            dimension_semantics=("parallel", "arbitrary"),
            vmem_limit_bytes=64 * 1024 * 1024,
        ),
    )(a_hat_bf16, x, w1, b1, w2p, b2p)

    return out_padded[:, :nclass]


# ------------------------------- JAX glue ----------------------------------
def normalized_adjacency(edge_index, num_nodes):
    """Dense Â = D^{-1/2}(A+I)D^{-1/2} (torch_geometric gcn_norm), stored bf16."""
    src, dst = edge_index[0], edge_index[1]
    loop = jnp.arange(num_nodes, dtype=src.dtype)
    src = jnp.concatenate([src, loop])
    dst = jnp.concatenate([dst, loop])
    ew = jnp.ones(src.shape[0], dtype=jnp.float32)

    deg = jnp.zeros((num_nodes,), jnp.float32).at[dst].add(ew)
    dinv = jnp.where(deg > 0, 1.0 / jnp.sqrt(deg), 0.0)
    norm = dinv[src] * ew * dinv[dst]

    # message flows src -> dst, aggregation at dst  =>  Â[dst, src] = norm
    a_hat = jnp.zeros((num_nodes, num_nodes), jnp.float32).at[dst, src].add(norm)
    return a_hat.astype(jnp.bfloat16)


def init_params(key, nfeat, nhid, nclass):
    """Deterministic xavier-uniform weights, zero biases (mirrors weights_init)."""
    k1, k2 = jax.random.split(key)

    def xavier(k, fan_in, fan_out, shape):
        bound = jnp.sqrt(6.0 / (fan_in + fan_out))
        return jax.random.uniform(k, shape, jnp.float32, -bound, bound)

    w1 = xavier(k1, nfeat, nhid, (nfeat, nhid))        # GCNConv weight
    b1 = jnp.zeros((1, nhid), jnp.float32)             # GCNConv bias
    w2 = xavier(k2, nhid, nclass, (nhid, nclass))      # fc weight (pre-transposed)
    b2 = jnp.zeros((1, nclass), jnp.float32)           # fc bias
    return w1, b1, w2, b2


# --------------------------------- main -------------------------------------
if __name__ == "__main__":
    key = jax.random.PRNGKey(0)
    k_x, k_e, k_p = jax.random.split(key, 3)

    # Small synthetic graph (big enough to exercise the 2x2 tile grid).
    N, nfeat, nhid, nclass, n_edges = 256, 64, 64, 8, 1024
    TM, TK = 128, 128

    x = jax.random.normal(k_x, (N, nfeat), jnp.float32)
    edge_index = jax.random.randint(k_e, (2, n_edges), 0, N, jnp.int32)

    w1, b1, w2, b2 = init_params(k_p, nfeat, nhid, nclass)
    a_hat = normalized_adjacency(edge_index, N)   # bf16 dense Â

    out = gcn_forward_pallas(a_hat, x, w1, b1, w2, b2, tm=TM, tk=TK)
    out = jax.block_until_ready(out)

    # Pure-JAX reference with matching bf16 quantization of Â and X·W1.
    a_f32 = a_hat.astype(jnp.float32)
    xw_q = (x @ w1).astype(jnp.bfloat16).astype(jnp.float32)
    h_ref = a_f32 @ xw_q + b1
    ref = h_ref @ w2 + b2

    assert out.shape == (N, nclass)
    assert jnp.allclose(out, ref, atol=2e-2, rtol=2e-2)

    print("KERNEL_OK")
</pallas_src>

<mosaic_0001>
module attributes {stable_mosaic.version = 11 : i64} {
  func.func @gcn_kernel(%arg0: i32, %arg1: i32, %arg2: memref<128x128xbf16, #tpu.memory_space<vmem>>, %arg3: memref<128x64xf32, #tpu.memory_space<vmem>>, %arg4: memref<64x64xf32, #tpu.memory_space<vmem>>, %arg5: memref<1x64xf32, #tpu.memory_space<vmem>>, %arg6: memref<64x128xf32, #tpu.memory_space<vmem>>, %arg7: memref<1x128xf32, #tpu.memory_space<vmem>>, %arg8: memref<128x128xf32, #tpu.memory_space<vmem>>, %arg9: memref<128x64xf32, #tpu.memory_space<vmem>>) attributes {dimension_semantics = [#tpu.dimension_semantics<parallel>, #tpu.dimension_semantics<arbitrary>], iteration_bounds = array<i64: 2, 2>, scalar_prefetch = 0 : i64, scratch_operands = 1 : i64, tpu.core_type = #tpu.core_type<tc>, window_params = [{transform_indices = @transform_0, window_bounds = array<i64: 128, 128>}, {transform_indices = @transform_1, window_bounds = array<i64: 128, 64>}, {pipeline_mode = #tpu.pipeline_mode<synchronous>, transform_indices = @transform_2, window_bounds = array<i64: 64, 64>}, {pipeline_mode = #tpu.pipeline_mode<synchronous>, transform_indices = @transform_3, window_bounds = array<i64: 1, 64>}, {pipeline_mode = #tpu.pipeline_mode<synchronous>, transform_indices = @transform_4, window_bounds = array<i64: 64, 128>}, {pipeline_mode = #tpu.pipeline_mode<synchronous>, transform_indices = @transform_5, window_bounds = array<i64: 1, 128>}, {transform_indices = @transform_6, window_bounds = array<i64: 128, 128>}]} {
    %c0_i32 = arith.constant 0 : i32
    %0 = arith.cmpi eq, %arg1, %c0_i32 : i32
    %1 = arith.extui %0 : i1 to i32
    %c0_i32_0 = arith.constant 0 : i32
    %2 = arith.cmpi ne, %1, %c0_i32_0 : i32
    scf.if %2 {
      %cst_12 = arith.constant 0.000000e+00 : f32
      %15 = vector.broadcast %cst_12 : f32 to vector<128x64xf32>
      %c0_13 = arith.constant 0 : index
      %c0_14 = arith.constant 0 : index
      %16 = vector.load %arg9[%c0_13, %c0_14] : memref<128x64xf32, #tpu.memory_space<vmem>>, vector<128x64xf32>
      tpu.vector_store %arg9[%c0_13, %c0_14], %15 {strides = array<i32>} : memref<128x64xf32, #tpu.memory_space<vmem>>, vector<128x64xf32>,
    } else {
    }
    %c0 = arith.constant 0 : index
    %c0_1 = arith.constant 0 : index
    %3 = vector.load %arg3[%c0, %c0_1] : memref<128x64xf32, #tpu.memory_space<vmem>>, vector<128x64xf32>
    %c0_2 = arith.constant 0 : index
    %c0_3 = arith.constant 0 : index
    %4 = vector.load %arg4[%c0_2, %c0_3] : memref<64x64xf32, #tpu.memory_space<vmem>>, vector<64x64xf32>
    %cst = arith.constant dense<0.000000e+00> : vector<128x64xf32>
    %5 = tpu.matmul %3, %4, %cst {dimension_numbers = #tpu.dot_dimension_numbers<[1], [0], [0], [1], [0, 0, 1, 1], [], []>} : vector<128x64xf32>, vector<64x64xf32>, vector<128x64xf32> -> vector<128x64xf32>
    %c0_4 = arith.constant 0 : index
    %c0_5 = arith.constant 0 : index
    %6 = vector.load %arg9[%c0_4, %c0_5] : memref<128x64xf32, #tpu.memory_space<vmem>>, vector<128x64xf32>
    %c0_6 = arith.constant 0 : index
    %c0_7 = arith.constant 0 : index
    %7 = vector.load %arg2[%c0_6, %c0_7] : memref<128x128xbf16, #tpu.memory_space<vmem>>, vector<128x128xbf16>
    %8 = arith.truncf %5 : vector<128x64xf32> to vector<128x64xbf16>
    %cst_8 = arith.constant dense<0.000000e+00> : vector<128x64xf32>
    %9 = tpu.matmul %7, %8, %cst_8 {dimension_numbers = #tpu.dot_dimension_numbers<[1], [0], [0], [1], [0, 0, 1, 1], [], []>} : vector<128x128xbf16>, vector<128x64xbf16>, vector<128x64xf32> -> vector<128x64xf32>
    %10 = arith.addf %6, %9 : vector<128x64xf32>
    %c0_9 = arith.constant 0 : index
    %c0_10 = arith.constant 0 : index
    %11 = vector.load %arg9[%c0_9, %c0_10] : memref<128x64xf32, #tpu.memory_space<vmem>>, vector<128x64xf32>
    tpu.vector_store %arg9[%c0_9, %c0_10], %10 {strides = array<i32>} : memref<128x64xf32, #tpu.memory_space<vmem>>, vector<128x64xf32>,
    %c1_i32 = arith.constant 1 : i32
    %12 = arith.cmpi eq, %arg1, %c1_i32 : i32
    %13 = arith.extui %12 : i1 to i32
    %c0_i32_11 = arith.constant 0 : i32
    %14 = arith.cmpi ne, %13, %c0_i32_11 : i32
    scf.if %14 {
      %c0_12 = arith.constant 0 : index
      %c0_13 = arith.constant 0 : index
      %15 = vector.load %arg9[%c0_12, %c0_13] : memref<128x64xf32, #tpu.memory_space<vmem>>, vector<128x64xf32>
      %c0_14 = arith.constant 0 : index
      %c0_15 = arith.constant 0 : index
      %16 = vector.load %arg5[%c0_14, %c0_15] : memref<1x64xf32, #tpu.memory_space<vmem>>, vector<1x64xf32>
      %17 = vector.broadcast %16 : vector<1x64xf32> to vector<128x64xf32>
      %18 = arith.addf %15, %17 : vector<128x64xf32>
      %c0_16 = arith.constant 0 : index
      %c0_17 = arith.constant 0 : index
      %19 = vector.load %arg6[%c0_16, %c0_17] : memref<64x128xf32, #tpu.memory_space<vmem>>, vector<64x128xf32>
      %cst_18 = arith.constant dense<0.000000e+00> : vector<128x128xf32>
      %20 = tpu.matmul %18, %19, %cst_18 {dimension_numbers = #tpu.dot_dimension_numbers<[1], [0], [0], [1], [0, 0, 1, 1], [], []>} : vector<128x64xf32>, vector<64x128xf32>, vector<128x128xf32> -> vector<128x128xf32>
      %c0_19 = arith.constant 0 : index
      %c0_20 = arith.constant 0 : index
      %21 = vector.load %arg7[%c0_19, %c0_20] : memref<1x128xf32, #tpu.memory_space<vmem>>, vector<1x128xf32>
      %22 = vector.broadcast %21 : vector<1x128xf32> to vector<128x128xf32>
      %23 = arith.addf %20, %22 : vector<128x128xf32>
      %c0_21 = arith.constant 0 : index
      %c0_22 = arith.constant 0 : index
      %24 = vector.load %arg8[%c0_21, %c0_22] : memref<128x128xf32, #tpu.memory_space<vmem>>, vector<128x128xf32>
      tpu.vector_store %arg8[%c0_21, %c0_22], %23 {strides = array<i32>} : memref<128x128xf32, #tpu.memory_space<vmem>>, vector<128x128xf32>,
    } else {
    }
    return
  }
  func.func @transform_0(%arg0: i32, %arg1: i32) -> (i32, i32) {
    %c0_i32 = arith.constant 0 : i32
    return %arg0, %arg1 : i32, i32
  }
  func.func @transform_1(%arg0: i32, %arg1: i32) -> (i32, i32) {
    %c0_i32 = arith.constant 0 : i32
    %c0_i32_0 = arith.constant 0 : i32
    return %arg1, %c0_i32 : i32, i32
  }
  func.func @transform_2(%arg0: i32, %arg1: i32) -> (i32, i32) {
    %c0_i32 = arith.constant 0 : i32
    %c0_i32_0 = arith.constant 0 : i32
    %c0_i32_1 = arith.constant 0 : i32
    return %c0_i32, %c0_i32_0 : i32, i32
  }
  func.func @transform_3(%arg0: i32, %arg1: i32) -> (i32, i32) {
    %c0_i32 = arith.constant 0 : i32
    %c0_i32_0 = arith.constant 0 : i32
    %c0_i32_1 = arith.constant 0 : i32
    return %c0_i32, %c0_i32_0 : i32, i32
  }
  func.func @transform_4(%arg0: i32, %arg1: i32) -> (i32, i32) {
    %c0_i32 = arith.constant 0 : i32
    %c0_i32_0 = arith.constant 0 : i32
    %c0_i32_1 = arith.constant 0 : i32
    return %c0_i32, %c0_i32_0 : i32, i32
  }
  func.func @transform_5(%arg0: i32, %arg1: i32) -> (i32, i32) {
    %c0_i32 = arith.constant 0 : i32
    %c0_i32_0 = arith.constant 0 : i32
    %c0_i32_1 = arith.constant 0 : i32
    return %c0_i32, %c0_i32_0 : i32, i32
  }
  func.func @transform_6(%arg0: i32, %arg1: i32) -> (i32, i32) {
    %c0_i32 = arith.constant 0 : i32
    %c0_i32_0 = arith.constant 0 : i32
    return %arg0, %c0_i32 : i32, i32
  }
}

</mosaic_0001>

<llo_original>
// kernel: tpu_custom_call.1
$region0: #{tpu_custom_call.1}
  #allocation0 [shape = 'u32[]', space=smem, size = 0x4, offset = 0x4, fixed_abs, tag = 'smem constant byte address 0x4 - core index']
  #allocation1 [shape = 'u32[144,128]{1,0:T(1,128)}', space=vmem, size = 0x12000, scoped, tag = 'internal scratch']
  #allocation2 [shape = 'f32[128,64]{1,0:T(8,128)}', space=vmem, size = 0x10000, scoped, tag = 'scratch operand']
  %s0 = inlined_call_operand.hbm [shape: bf16[256,256], index: 0, kind: input, shape index: {}]
  %s1 = inlined_call_operand.hbm [shape: f32[256,64], index: 1, kind: input, shape index: {}]
  %s2 = inlined_call_operand.hbm [shape: f32[64,64], index: 2, kind: input, shape index: {}]
  %s3 = inlined_call_operand.hbm [shape: f32[1,64], index: 3, kind: input, shape index: {}]
  %s4 = inlined_call_operand.hbm [shape: f32[64,128], index: 4, kind: input, shape index: {}]
  %s5 = inlined_call_operand.hbm [shape: f32[1,128], index: 5, kind: input, shape index: {}]
  %s6 = inlined_call_operand.hbm [shape: f32[256,128], index: 6, kind: output, shape index: {}]
  %s7 = sld [smem:[#allocation0]]
  $region89: #{tpu_custom_call.1} parent=0
    _
  %s9 = ssub.s32 1, %s7
  %s10 = scalar_select 0, %s9, %s7
  $region1: #{tpu_custom_call.1} parent=0
    #allocation3 [shape = 'u8[65536]{0}', space=vmem, size = 0x10000, scoped, tag = 'input window, operand 0']
    #allocation4 [shape = 's32[2]{0}', space=sflag, size = 0x8, scoped, tag = 'scoped memory for tpu_custom_call.1']
    #allocation5 [shape = 's32[2]{0}', space=sflag, size = 0x8, scoped, tag = 'scoped memory for tpu_custom_call.1']
    #allocation6 [shape = 'u8[131072]{0}', space=vmem, size = 0x20000, scoped, tag = 'input window, operand 1']
    #allocation7 [shape = 's32[2]{0}', space=sflag, size = 0x8, scoped, tag = 'scoped memory for tpu_custom_call.1']
    #allocation8 [shape = 'u8[32768]{0}', space=vmem, size = 0x8000, scoped, tag = 'input window, operand 2, single buffered']
    #allocation9 [shape = 'u8[512]{0}', space=vmem, size = 0x400, scoped, tag = 'input window, operand 3, single buffered']
    #allocation10 [shape = 's32[1]{0}', space=sflag, size = 0x4, scoped, tag = 'scoped memory for tpu_custom_call.1']
    #allocation11 [shape = 'u8[32768]{0}', space=vmem, size = 0x8000, scoped, tag = 'input window, operand 4, single buffered']
    #allocation12 [shape = 'u8[512]{0}', space=vmem, size = 0x400, scoped, tag = 'input window, operand 5, single buffered']
    #allocation13 [shape = 's32[1]{0}', space=sflag, size = 0x4, scoped, tag = 'scoped memory for tpu_custom_call.1']
    #allocation14 [shape = 'u8[131072]{0}', space=vmem, size = 0x20000, scoped, tag = 'output window, operand 0']
    %11 = vsyncpa [#allocation4], 0
    %s12 = scalar_lea.sflag [#allocation4], 1
    %13 = vsyncpa %s12, 0
    %14 = vsyncpa [#allocation7], 0
    %s15 = scalar_lea.sflag [#allocation7], 1
    %16 = vsyncpa %s15, 0
    %17 = vsyncpa [#allocation10], 0
    %18 = vsyncpa [#allocation13], 0
    %19 = vsyncpa [#allocation5], 0
    %s20 = scalar_lea.sflag [#allocation5], 1
    %21 = vsyncpa %s20, 0
    loop: start=0, step=1, limit=6
    $region2: #{tpu_custom_call.1} parent=1 // loop_pre_header
      _
    $region3: #{tpu_custom_call.1} parent=1 // loop_header
      %s23 = sphi 0, %s27
      %p24 = scmp.ge.s32.totalorder %s23, 6
      %s30 = sphi 0, %s42
      %s31 = sphi 0, %s38
      %s32 = sphi 0, %s30
      %s33 = sphi 0, %s31
      %s34 = sphi 0, %s32
      %s35 = sphi 0, %s33
      %s47 = sphi 0, %s49
      %s50 = sphi 0, %s47
      %s51 = sphi 0, %s50
      %s67 = sphi 0, %s51
      %s73 = sphi 0, %s75
      %s76 = sphi 0, %s73
      %s77 = sphi 0, %s76
      %s93 = sphi 0, %s77
      %s97 = sphi 0, %s97
      %s99 = sphi 0, %s97
      %s100 = sphi 0, %s99
      %s114 = sphi 0, %s100
      %s118 = sphi 0, %s118
      %s120 = sphi 0, %s118
      %s121 = sphi 0, %s120
      %s135 = sphi 0, %s121
      %s139 = sphi 0, %s139
      %s141 = sphi 0, %s139
      %s142 = sphi 0, %s141
      %s156 = sphi 0, %s142
      %s160 = sphi 0, %s160
      %s162 = sphi 0, %s160
      %s163 = sphi 0, %s162
      %s177 = sphi 0, %s163
      %s183 = sphi 0, %s185
      %s186 = sphi 0, %s183
      %s187 = sphi 0, %s186
      %s203 = sphi 0, %s187
    $region4: #{tpu_custom_call.1} parent=1 // loop_header_branch
      %26 = sbr.rel (%p24) target = $region8
    $region5: #{tpu_custom_call.1} parent=1 // loop_body
      %s28 = ssub.s32 %s23, 1
      %s29 = ssub.s32 %s23, 2
      %s36 = sadd.s32 1, %s31
      %p37 = scmp.ge.s32.totalorder %s36, 2
      %s38 = scalar_select %p37, 0, %s36
      %s39 = sadd.s32 1, %s30
      %s40 = scalar_select %p37, %s39, %s30
      %p41 = scmp.ge.s32.totalorder %s40, 2
      %s42 = scalar_select %p41, 0, %s40
      %s43 = ssub.s32 %s30, %s42
      %s44 = ssub.s32 %s31, %s38
      %s45 = sor.u32 %s43, %s44
      %p46 = scmp.eq.s32.totalorder %s45, 0
      %s48 = sadd.s32 %s47, 1
      %s49 = scalar_select %p46, %s47, %s48
      %p52 = pneg %p46
      %p53 = scmp.eq.s32.totalorder %s23, 3
      %p54 = por %p52, %p53
      %p55 = scmp.ne.s32.totalorder %s47, %s50
      %p56 = scmp.eq.s32.totalorder %s23, 0
      %p57 = por %p55, %p56
      %p58 = scmp.ne.s32.totalorder %s47, %s50
      %p59 = scmp.eq.s32.totalorder %s28, 3
      %p60 = por %p58, %p59
      %p61 = scmp.ne.s32.totalorder %s50, %s51
      %p62 = scmp.eq.s32.totalorder %s28, 0
      %p63 = por %p61, %p62
      %p64 = scmp.ne.s32.totalorder %s50, %s51
      %p65 = scmp.eq.s32.totalorder %s29, 3
      %p66 = por %p64, %p65
      %p68 = scmp.ne.s32.totalorder %s51, %s67
      %p69 = scmp.eq.s32.totalorder %s29, 0
      %p70 = por %p68, %p69
      %s71 = ssub.s32 %s31, %s38
      %p72 = scmp.eq.s32.totalorder %s71, 0
      %s74 = sadd.s32 %s73, 1
      %s75 = scalar_select %p72, %s73, %s74
      %p78 = pneg %p72
      %p79 = scmp.eq.s32.totalorder %s23, 3
      %p80 = por %p78, %p79
      %p81 = scmp.ne.s32.totalorder %s73, %s76
      %p82 = scmp.eq.s32.totalorder %s23, 0
      %p83 = por %p81, %p82
      %p84 = scmp.ne.s32.totalorder %s73, %s76
      %p85 = scmp.eq.s32.totalorder %s28, 3
      %p86 = por %p84, %p85
      %p87 = scmp.ne.s32.totalorder %s76, %s77
      %p88 = scmp.eq.s32.totalorder %s28, 0
      %p89 = por %p87, %p88
      %p90 = scmp.ne.s32.totalorder %s76, %s77
      %p91 = scmp.eq.s32.totalorder %s29, 3
      %p92 = por %p90, %p91
      %p94 = scmp.ne.s32.totalorder %s77, %s93
      %p95 = scmp.eq.s32.totalorder %s29, 0
      %p96 = por %p94, %p95
      %s98 = sadd.s32 %s97, 1
      %p101 = scmp.eq.s32.totalorder %s23, 3
      %p102 = scmp.ne.s32.totalorder %s97, %s99
      %p103 = scmp.eq.s32.totalorder %s23, 0
      %p104 = por %p102, %p103
      %p105 = scmp.ne.s32.totalorder %s97, %s99
      %p106 = scmp.eq.s32.totalorder %s28, 3
      %p107 = por %p105, %p106
      %p108 = scmp.ne.s32.totalorder %s99, %s100
      %p109 = scmp.eq.s32.totalorder %s28, 0
      %p110 = por %p108, %p109
      %p111 = scmp.ne.s32.totalorder %s99, %s100
      %p112 = scmp.eq.s32.totalorder %s29, 3
      %p113 = por %p111, %p112
      %p115 = scmp.ne.s32.totalorder %s100, %s114
      %p116 = scmp.eq.s32.totalorder %s29, 0
      %p117 = por %p115, %p116
      %s119 = sadd.s32 %s118, 1
      %p122 = scmp.eq.s32.totalorder %s23, 3
      %p123 = scmp.ne.s32.totalorder %s118, %s120
      %p124 = scmp.eq.s32.totalorder %s23, 0
      %p125 = por %p123, %p124
      %p126 = scmp.ne.s32.totalorder %s118, %s120
      %p127 = scmp.eq.s32.totalorder %s28, 3
      %p128 = por %p126, %p127
      %p129 = scmp.ne.s32.totalorder %s120, %s121
      %p130 = scmp.eq.s32.totalorder %s28, 0
      %p131 = por %p129, %p130
      %p132 = scmp.ne.s32.totalorder %s120, %s121
      %p133 = scmp.eq.s32.totalorder %s29, 3
      %p134 = por %p132, %p133
      %p136 = scmp.ne.s32.totalorder %s121, %s135
      %p137 = scmp.eq.s32.totalorder %s29, 0
      %p138 = por %p136, %p137
      %s140 = sadd.s32 %s139, 1
      %p143 = scmp.eq.s32.totalorder %s23, 3
      %p144 = scmp.ne.s32.totalorder %s139, %s141
      %p145 = scmp.eq.s32.totalorder %s23, 0
      %p146 = por %p144, %p145
      %p147 = scmp.ne.s32.totalorder %s139, %s141
      %p148 = scmp.eq.s32.totalorder %s28, 3
      %p149 = por %p147, %p148
      %p150 = scmp.ne.s32.totalorder %s141, %s142
      %p151 = scmp.eq.s32.totalorder %s28, 0
      %p152 = por %p150, %p151
      %p153 = scmp.ne.s32.totalorder %s141, %s142
      %p154 = scmp.eq.s32.totalorder %s29, 3
      %p155 = por %p153, %p154
      %p157 = scmp.ne.s32.totalorder %s142, %s156
      %p158 = scmp.eq.s32.totalorder %s29, 0
      %p159 = por %p157, %p158
      %s161 = sadd.s32 %s160, 1
      %p164 = scmp.eq.s32.totalorder %s23, 3
      %p165 = scmp.ne.s32.totalorder %s160, %s162
      %p166 = scmp.eq.s32.totalorder %s23, 0
      %p167 = por %p165, %p166
      %p168 = scmp.ne.s32.totalorder %s160, %s162
      %p169 = scmp.eq.s32.totalorder %s28, 3
      %p170 = por %p168, %p169
      %p171 = scmp.ne.s32.totalorder %s162, %s163
      %p172 = scmp.eq.s32.totalorder %s28, 0
      %p173 = por %p171, %p172
      %p174 = scmp.ne.s32.totalorder %s162, %s163
      %p175 = scmp.eq.s32.totalorder %s29, 3
      %p176 = por %p174, %p175
      %p178 = scmp.ne.s32.totalorder %s163, %s177
      %p179 = scmp.eq.s32.totalorder %s29, 0
      %p180 = por %p178, %p179
      %s181 = ssub.s32 %s30, %s42
      %p182 = scmp.eq.s32.totalorder %s181, 0
      %s184 = sadd.s32 %s183, 1
      %s185 = scalar_select %p182, %s183, %s184
      %p188 = pneg %p182
      %p189 = scmp.eq.s32.totalorder %s23, 3
      %p190 = por %p188, %p189
      %p191 = scmp.ne.s32.totalorder %s183, %s186
      %p192 = scmp.eq.s32.totalorder %s23, 0
      %p193 = por %p191, %p192
      %p194 = scmp.ne.s32.totalorder %s183, %s186
      %p195 = scmp.eq.s32.totalorder %s28, 3
      %p196 = por %p194, %p195
      %p197 = scmp.ne.s32.totalorder %s186, %s187
      %p198 = scmp.eq.s32.totalorder %s28, 0
      %p199 = por %p197, %p198
      %p200 = scmp.ne.s32.totalorder %s186, %s187
      %p201 = scmp.eq.s32.totalorder %s29, 3
      %p202 = por %p200, %p201
      %p204 = scmp.ne.s32.totalorder %s187, %s203
      %p205 = scmp.eq.s32.totalorder %s29, 0
      %p206 = por %p204, %p205
      %p207 = scmp.le.s32.totalorder 1, %s23
      %p208 = scmp.lt.s32.totalorder %s23, 5
      %p209 = pnand %p207, %p208
      %p210 = pneg %p209
      // Predicated region
      $region9: #{tpu_custom_call.1} parent=5 // pred_check
        _
      $region10: #{tpu_custom_call.1} parent=5 // pred_check_branch
        %212 = sbr.rel (%p209) target = $region12
      $region11: #{tpu_custom_call.1} parent=5 // pred_region
        %s213 = ssub.s32 %s23, 1
        // Predicated region
        $region13: #{tpu_custom_call.1} parent=11 // pred_check
          %p214 = pneg %p110
        $region14: #{tpu_custom_call.1} parent=11 // pred_check_branch
          %216 = sbr.rel (%p214) target = $region16
        $region15: #{tpu_custom_call.1} parent=11 // pred_region
          %s218 = ssub.s32 1024, 1024
          %219 = vsyncadd [#allocation7], %s218
          %s220 = sshll.u32 [#allocation8], 4
          %s221 = int_to_ptr.vmem [resolvable:$true] %s220
          %226 = dma.hbm_to_vmem [thread:$0]  %s2, 1024, %s221, [#allocation7], 128, 128, 8
        $region16: #{tpu_custom_call.1} parent=11 // pred_fallthru
          _
        // Predicated region
        $region17: #{tpu_custom_call.1} parent=11 // pred_check
          %p227 = pneg %p131
        $region18: #{tpu_custom_call.1} parent=11 // pred_check_branch
          %229 = sbr.rel (%p227) target = $region20
        $region19: #{tpu_custom_call.1} parent=11 // pred_region
          %s231 = ssub.s32 16, 16
          %232 = vsyncadd [#allocation10], %s231
          %s234 = sshll.u32 [#allocation9], 4
          %s235 = int_to_ptr.vmem [resolvable:$true] %s234
          %237 = dma.hbm_to_vmem [thread:$0]  %s3, 16, %s235, [#allocation10]
        $region20: #{tpu_custom_call.1} parent=11 // pred_fallthru
          _
        // Predicated region
        $region21: #{tpu_custom_call.1} parent=11 // pred_check
          %p238 = pneg %p152
        $region22: #{tpu_custom_call.1} parent=11 // pred_check_branch
          %240 = sbr.rel (%p238) target = $region24
        $region23: #{tpu_custom_call.1} parent=11 // pred_region
          %s242 = ssub.s32 1024, 1024
          %243 = vsyncadd [#allocation10], %s242
          %s244 = sshll.u32 [#allocation11], 4
          %s245 = int_to_ptr.vmem [resolvable:$true] %s244
          %250 = dma.hbm_to_vmem [thread:$0]  %s4, 1024, %s245, [#allocation10], 128, 128, 8
        $region24: #{tpu_custom_call.1} parent=11 // pred_fallthru
          _
        // Predicated region
        $region25: #{tpu_custom_call.1} parent=11 // pred_check
          %p251 = pneg %p173
        $region26: #{tpu_custom_call.1} parent=11 // pred_check_branch
          %253 = sbr.rel (%p251) target = $region28
        $region27: #{tpu_custom_call.1} parent=11 // pred_region
          %s255 = ssub.s32 16, 16
          %256 = vsyncadd [#allocation13], %s255
          %s258 = sshll.u32 [#allocation12], 4
          %s259 = int_to_ptr.vmem [resolvable:$true] %s258
          %261 = dma.hbm_to_vmem [thread:$0]  %s5, 16, %s259, [#allocation13]
        $region28: #{tpu_custom_call.1} parent=11 // pred_fallthru
          _
      $region12: #{tpu_custom_call.1} parent=5 // pred_fallthru
        _
      %p262 = scmp.lt.s32.totalorder %s23, 4
      // Predicated region
      $region29: #{tpu_custom_call.1} parent=5 // pred_check
        %p263 = pneg %p262
      $region30: #{tpu_custom_call.1} parent=5 // pred_check_branch
        %265 = sbr.rel (%p263) target = $region32
      $region31: #{tpu_custom_call.1} parent=5 // pred_region
        // Predicated region
        $region33: #{tpu_custom_call.1} parent=31 // pred_check
          %p266 = pneg %p57
        $region34: #{tpu_custom_call.1} parent=31 // pred_check_branch
          %268 = sbr.rel (%p266) target = $region36
        $region35: #{tpu_custom_call.1} parent=31 // pred_region
          %s269 = sand.u32 %s47, 1
          %s270 = scalar_lea.sflag [#allocation4], %s269
          %s271 = sand.u32 %s47, 1
          %s272 = smul.addr %s271, 64
          %s273 = scalar_lea.vmem [#allocation3], %s272
          %s274 = smul.u32 16, %s30
          %s276 = ssub.s32 1024, 1024
          %277 = vsyncadd %s270, %s276
          %s278 = smul.addr %s274, 2
          %s279 = sadd.s32 %s31, %s278
          %s280 = smul.addr %s279, 64
          %s281 = scalar_lea.hbm %s0, %s280
          %s282 = sshll.u32 %s273, 4
          %s283 = int_to_ptr.vmem [resolvable:$true] %s282
          %288 = dma.hbm_to_vmem [thread:$0]  %s281, 1024, %s283, %s270, 128, 64, 4
        $region36: #{tpu_custom_call.1} parent=31 // pred_fallthru
          _
        // Predicated region
        $region37: #{tpu_custom_call.1} parent=31 // pred_check
          %p289 = pneg %p83
        $region38: #{tpu_custom_call.1} parent=31 // pred_check_branch
          %291 = sbr.rel (%p289) target = $region40
        $region39: #{tpu_custom_call.1} parent=31 // pred_region
          %s292 = sand.u32 %s23, 1
          %s293 = scalar_lea.sflag [#allocation7], %s292
          %s294 = sand.u32 %s73, 1
          %s295 = smul.addr %s294, 128
          %s296 = scalar_lea.vmem [#allocation6], %s295
          %s297 = smul.u32 16, %s31
          %s299 = ssub.s32 2048, 2048
          %300 = vsyncadd %s293, %s299
          %s301 = smul.addr %s297, 128
          %s302 = scalar_lea.hbm %s1, %s301
          %s303 = sshll.u32 %s296, 4
          %s304 = int_to_ptr.vmem [resolvable:$true] %s303
          %309 = dma.hbm_to_vmem [thread:$0]  %s302, 2048, %s304, %s293, 128, 128, 8
        $region40: #{tpu_custom_call.1} parent=31 // pred_fallthru
          _
      $region32: #{tpu_custom_call.1} parent=5 // pred_fallthru
        _
      %p310 = scmp.le.s32.totalorder 1, %s23
      %p311 = scmp.lt.s32.totalorder %s23, 5
      %p312 = pnand %p310, %p311
      %p313 = pneg %p312
      // Predicated region
      $region41: #{tpu_custom_call.1} parent=5 // pred_check
        _
      $region42: #{tpu_custom_call.1} parent=5 // pred_check_branch
        %315 = sbr.rel (%p312) target = $region44
      $region43: #{tpu_custom_call.1} parent=5 // pred_region
        %s316 = ssub.s32 %s23, 1
        %s317 = sand.u32 %s50, 1
        %s318 = scalar_lea.sflag [#allocation4], %s317
        %s319 = sand.u32 %s50, 1
        %s320 = smul.addr %s319, 64
        %s321 = scalar_lea.vmem [#allocation3], %s320
        // Predicated region
        $region45: #{tpu_custom_call.1} parent=43 // pred_check
          %p322 = pneg %p63
        $region46: #{tpu_custom_call.1} parent=43 // pred_check_branch
          %324 = sbr.rel (%p322) target = $region48
        $region47: #{tpu_custom_call.1} parent=43 // pred_region
          %325 = dma.done %s318, 1024
        $region48: #{tpu_custom_call.1} parent=43 // pred_fallthru
          _
        %s326 = sand.u32 %s28, 1
        %s327 = scalar_lea.sflag [#allocation7], %s326
        %s328 = sand.u32 %s76, 1
        %s329 = smul.addr %s328, 128
        %s330 = scalar_lea.vmem [#allocation6], %s329
        // Predicated region
        $region49: #{tpu_custom_call.1} parent=43 // pred_check
          %p331 = pneg %p89
        $region50: #{tpu_custom_call.1} parent=43 // pred_check_branch
          %333 = sbr.rel (%p331) target = $region52
        $region51: #{tpu_custom_call.1} parent=43 // pred_region
          %334 = dma.done %s327, 2048
        $region52: #{tpu_custom_call.1} parent=43 // pred_fallthru
          _
        // Predicated region
        $region53: #{tpu_custom_call.1} parent=43 // pred_check
          %p335 = pneg %p110
        $region54: #{tpu_custom_call.1} parent=43 // pred_check_branch
          %337 = sbr.rel (%p335) target = $region56
        $region55: #{tpu_custom_call.1} parent=43 // pred_region
          %338 = dma.done [#allocation7], 1024
        $region56: #{tpu_custom_call.1} parent=43 // pred_fallthru
          _
        // Predicated region
        $region57: #{tpu_custom_call.1} parent=43 // pred_check
          %p339 = pneg %p131
        $region58: #{tpu_custom_call.1} parent=43 // pred_check_branch
          %341 = sbr.rel (%p339) target = $region60
        $region59: #{tpu_custom_call.1} parent=43 // pred_region
          %342 = dma.done [#allocation10], 16
        $region60: #{tpu_custom_call.1} parent=43 // pred_fallthru
          _
        // Predicated region
        $region61: #{tpu_custom_call.1} parent=43 // pred_check
          %p343 = pneg %p152
        $region62: #{tpu_custom_call.1} parent=43 // pred_check_branch
          %345 = sbr.rel (%p343) target = $region64
        $region63: #{tpu_custom_call.1} parent=43 // pred_region
          %346 = dma.done [#allocation10], 1024
        $region64: #{tpu_custom_call.1} parent=43 // pred_fallthru
          _
        // Predicated region
        $region65: #{tpu_custom_call.1} parent=43 // pred_check
          %p347 = pneg %p173
        $region66: #{tpu_custom_call.1} parent=43 // pred_check_branch
          %349 = sbr.rel (%p347) target = $region68
        $region67: #{tpu_custom_call.1} parent=43 // pred_region
          %350 = dma.done [#allocation13], 16
        $region68: #{tpu_custom_call.1} parent=43 // pred_fallthru
          _
        %s351 = sand.u32 %s50, 1
        %s352 = scalar_lea.sflag [#allocation4], %s351
        %s353 = sand.u32 %s50, 1
        %s354 = smul.addr %s353, 64
        %s355 = scalar_lea.vmem [#allocation3], %s354
        %p356 = pneg %p63
        %p357 = pneg %p60
        %s358 = sand.u32 %s28, 1
        %s359 = scalar_lea.sflag [#allocation7], %s358
        %s360 = sand.u32 %s76, 1
        %s361 = smul.addr %s360, 128
        %s362 = scalar_lea.vmem [#allocation6], %s361
        %p363 = pneg %p89
        %p364 = pneg %p86
        %p365 = pneg %p110
        %p366 = pneg %p107
        %p367 = pneg %p131
        %p368 = pneg %p128
        %p369 = pneg %p152
        %p370 = pneg %p149
        %p371 = pneg %p173
        %p372 = pneg %p170
        %p373 = pneg %p199
        %p374 = pneg %p196
        %s375 = sand.u32 %s186, 1
        %s376 = scalar_lea.sflag [#allocation5], %s375
        %s377 = sand.u32 %s186, 1
        %s378 = smul.addr %s377, 128
        %s379 = scalar_lea.vmem [#allocation14], %s378
        %s380 = smul.u32 16, %s32
        %s381 = smul.u32 16, %s33
        %s382 = smul.u32 16, %s32
        %p384 = scmp.eq.s32.totalorder %s33, 0
        // Predicated region
        $region69: #{tpu_custom_call.1} parent=43 // pred_check
          %p385 = pneg %p384
        $region70: #{tpu_custom_call.1} parent=43 // pred_check_branch
          %387 = sbr.rel (%p385) target = $region72
        $region71: #{tpu_custom_call.1} parent=43 // pred_region
          %vm388 = vcmask 523264
          %389 = vst.msk [vmem:[#allocation2] sm:$0xff] %vm388, 0.0
          %390 = vst.msk [vmem:[#allocation2 + $0x8] sm:$0xff] %vm388, 0.0
          %391 = vst.msk [vmem:[#allocation2 + $0x10] sm:$0xff] %vm388, 0.0
          %392 = vst.msk [vmem:[#allocation2 + $0x18] sm:$0xff] %vm388, 0.0
          %393 = vst.msk [vmem:[#allocation2 + $0x20] sm:$0xff] %vm388, 0.0
          %394 = vst.msk [vmem:[#allocation2 + $0x28] sm:$0xff] %vm388, 0.0
          %395 = vst.msk [vmem:[#allocation2 + $0x30] sm:$0xff] %vm388, 0.0
          %396 = vst.msk [vmem:[#allocation2 + $0x38] sm:$0xff] %vm388, 0.0
          %397 = vst.msk [vmem:[#allocation2 + $0x40] sm:$0xff] %vm388, 0.0
          %398 = vst.msk [vmem:[#allocation2 + $0x48] sm:$0xff] %vm388, 0.0
          %399 = vst.msk [vmem:[#allocation2 + $0x50] sm:$0xff] %vm388, 0.0
          %400 = vst.msk [vmem:[#allocation2 + $0x58] sm:$0xff] %vm388, 0.0
          %401 = vst.msk [vmem:[#allocation2 + $0x60] sm:$0xff] %vm388, 0.0
          %402 = vst.msk [vmem:[#allocation2 + $0x68] sm:$0xff] %vm388, 0.0
          %403 = vst.msk [vmem:[#allocation2 + $0x70] sm:$0xff] %vm388, 0.0
          %404 = vst.msk [vmem:[#allocation2 + $0x78] sm:$0xff] %vm388, 0.0
        $region72: #{tpu_custom_call.1} parent=43 // pred_fallthru
          _
        %v405 = vld [vmem:[%s330] sm:$0xff]
        %v406 = vld [vmem:[%s330 + $0x8] sm:$0xff]
        %v407 = vld [vmem:[%s330 + $0x10] sm:$0xff]
        %v408 = vld [vmem:[%s330 + $0x18] sm:$0xff]
        %v409 = vld [vmem:[%s330 + $0x20] sm:$0xff]
        %v410 = vld [vmem:[%s330 + $0x28] sm:$0xff]
        %v411 = vld [vmem:[%s330 + $0x30] sm:$0xff]
        %v412 = vld [vmem:[%s330 + $0x38] sm:$0xff]
        %v413 = vld [vmem:[%s330 + $0x40] sm:$0xff]
        %v414 = vld [vmem:[%s330 + $0x48] sm:$0xff]
        %v415 = vld [vmem:[%s330 + $0x50] sm:$0xff]
        %v416 = vld [vmem:[%s330 + $0x58] sm:$0xff]
        %v417 = vld [vmem:[%s330 + $0x60] sm:$0xff]
        %v418 = vld [vmem:[%s330 + $0x68] sm:$0xff]
        %v419 = vld [vmem:[%s330 + $0x70] sm:$0xff]
        %v420 = vld [vmem:[%s330 + $0x78] sm:$0xff]
        %v421 = vld [vmem:[#allocation8] sm:$0xff]
        %v422 = vld [vmem:[#allocation8 + $0x8] sm:$0xff]
        %v423 = vld [vmem:[#allocation8 + $0x10] sm:$0xff]
        %v424 = vld [vmem:[#allocation8 + $0x18] sm:$0xff]
        %v425 = vld [vmem:[#allocation8 + $0x20] sm:$0xff]
        %v426 = vld [vmem:[#allocation8 + $0x28] sm:$0xff]
        %v427 = vld [vmem:[#allocation8 + $0x30] sm:$0xff]
        %v428 = vld [vmem:[#allocation8 + $0x38] sm:$0xff]
        %vm429 = vcmask 523264
        %v431 = vsel %vm429, %v405, 0
        %v434 = vsel %vm429, %v406, 0
        %v437 = vsel %vm429, %v407, 0
        %v440 = vsel %vm429, %v408, 0
        %v443 = vsel %vm429, %v409, 0
        %v446 = vsel %vm429, %v410, 0
        %v449 = vsel %vm429, %v411, 0
        %v452 = vsel %vm429, %v412, 0
        %v455 = vsel %vm429, %v413, 0
        %v458 = vsel %vm429, %v414, 0
        %v461 = vsel %vm429, %v415, 0
        %v464 = vsel %vm429, %v416, 0
        %v467 = vsel %vm429, %v417, 0
        %v470 = vsel %vm429, %v418, 0
        %v473 = vsel %vm429, %v419, 0
        %v476 = vsel %vm429, %v420, 0
        %478 = vmatprep.subr.mxu0 0.0
        %479 = vmatpush1.msra.mxu0 %v421
        %480 = vmatprep.subr.mxu0 0.0
        %481 = vmatpush1.msra.mxu0 %v422
        %482 = vmatprep.subr.mxu0 0.0
        %483 = vmatpush1.msra.mxu0 %v423
        %484 = vmatprep.subr.mxu0 0.0
        %485 = vmatpush1.msra.mxu0 %v424
        %486 = vmatprep.subr.mxu0 0.0
        %487 = vmatpush1.msra.mxu0 %v425
        %488 = vmatprep.subr.mxu0 0.0
        %489 = vmatpush1.msra.mxu0 %v426
        %490 = vmatprep.subr.mxu0 0.0
        %491 = vmatpush1.msra.mxu0 %v427
        %492 = vmatprep.subr.mxu0 0.0
        %493 = vmatpush1.msra.mxu0 %v428
        %494 = vmatprep.subr.mxu0 0.0
        %495 = vmatpush1.msra.mxu0 0.0
        %496 = vmatprep.subr.mxu0 0.0
        %497 = vmatpush1.msra.mxu0 0.0
        %498 = vmatprep.subr.mxu0 0.0
        %499 = vmatpush1.msra.mxu0 0.0
        %500 = vmatprep.subr.mxu0 0.0
        %501 = vmatpush1.msra.mxu0 0.0
        %502 = vmatprep.subr.mxu0 0.0
        %503 = vmatpush1.msra.mxu0 0.0
        %504 = vmatprep.subr.mxu0 0.0
        %505 = vmatpush1.msra.mxu0 0.0
        %506 = vmatprep.subr.mxu0 0.0
        %507 = vmatpush1.msra.mxu0 0.0
        %508 = vmatprep.subr.mxu0 0.0
        %509 = vmatpush1.msra.mxu0 0.0
        %510 = vmatprep.subr.mxu0 0.0
        %511 = vmatpush1.msra.mxu0 0.0
        %512 = vmatprep.subr.mxu0 0.0
        %513 = vmatpush1.msra.mxu0 0.0
        %514 = vmatprep.subr.mxu0 0.0
        %515 = vmatpush1.msra.mxu0 0.0
        %516 = vmatprep.subr.mxu0 0.0
        %517 = vmatpush1.msra.mxu0 0.0
        %518 = vmatprep.subr.mxu0 0.0
        %519 = vmatpush1.msra.mxu0 0.0
        %520 = vmatprep.subr.mxu0 0.0
        %521 = vmatpush1.msra.mxu0 0.0
        %522 = vmatprep.subr.mxu0 0.0
        %523 = vmatpush1.msra.mxu0 0.0
        %524 = vmatprep.subr.mxu0 0.0
        %525 = vmatpush1.msra.mxu0 0.0
        %526 = vmatprep.subr.mxu0 0.0
        %527 = vmatpush1.msra.mxu0 0.0
        %528 = vmatprep.subr.mxu0 0.0
        %529 = vmatpush1.msra.mxu0 0.0
        %530 = vmatprep.subr.mxu0 0.0
        %531 = vmatpush1.msra.mxu0 0.0
        %532 = vmatprep.subr.mxu0 0.0
        %533 = vmatpush1.msra.mxu0 0.0
        %534 = vmatprep.subr.mxu0 0.0
        %535 = vmatpush1.msra.mxu0 0.0
        %536 = vmatprep.subr.mxu0 0.0
        %537 = vmatpush1.msra.mxu0 0.0
        %538 = vmatprep.subr.mxu0 0.0
        %539 = vmatpush1.msra.mxu0 0.0
        %540 = vmatprep.subr.mxu0 0.0
        %541 = vmatpush1.msra.mxu0 0.0
        %542 = vmatprep.mubr.f32.mxu0 0.0
        %543 = vmatmul.mubr.f32.gmra.mrb[0].mxu0 %v431
        %v544 = vpop.f32.mrb[0].mxu0
        %v545 = vadd.f32 0.0, %v544
        %v546 = vpop.f32.mrb[0].mxu0
        %547 = vmatprep.mubr.f32.mxu0 0.0
        %548 = vmatmul.mubr.f32.gmra.mrb[0].mxu0 %v434
        %v549 = vpop.f32.mrb[0].mxu0
        %v550 = vadd.f32 0.0, %v549
        %v551 = vpop.f32.mrb[0].mxu0
        %552 = vmatprep.mubr.f32.mxu0 0.0
        %553 = vmatmul.mubr.f32.gmra.mrb[0].mxu0 %v437
        %v554 = vpop.f32.mrb[0].mxu0
        %v555 = vadd.f32 0.0, %v554
        %v556 = vpop.f32.mrb[0].mxu0
        %557 = vmatprep.mubr.f32.mxu0 0.0
        %558 = vmatmul.mubr.f32.gmra.mrb[0].mxu0 %v440
        %v559 = vpop.f32.mrb[0].mxu0
        %v560 = vadd.f32 0.0, %v559
        %v561 = vpop.f32.mrb[0].mxu0
        %562 = vmatprep.mubr.f32.mxu0 0.0
        %563 = vmatmul.mubr.f32.gmra.mrb[0].mxu0 %v443
        %v564 = vpop.f32.mrb[0].mxu0
        %v565 = vadd.f32 0.0, %v564
        %v566 = vpop.f32.mrb[0].mxu0
        %567 = vmatprep.mubr.f32.mxu0 0.0
        %568 = vmatmul.mubr.f32.gmra.mrb[0].mxu0 %v446
        %v569 = vpop.f32.mrb[0].mxu0
        %v570 = vadd.f32 0.0, %v569
        %v571 = vpop.f32.mrb[0].mxu0
        %572 = vmatprep.mubr.f32.mxu0 0.0
        %573 = vmatmul.mubr.f32.gmra.mrb[0].mxu0 %v449
        %v574 = vpop.f32.mrb[0].mxu0
        %v575 = vadd.f32 0.0, %v574
        %v576 = vpop.f32.mrb[0].mxu0
        %577 = vmatprep.mubr.f32.mxu0 0.0
        %578 = vmatmul.mubr.f32.gmra.mrb[0].mxu0 %v452
        %v579 = vpop.f32.mrb[0].mxu0
        %v580 = vadd.f32 0.0, %v579
        %v581 = vpop.f32.mrb[0].mxu0
        %582 = vmatprep.mubr.f32.mxu0 0.0
        %583 = vmatmul.mubr.f32.gmra.mrb[0].mxu0 %v455
        %v584 = vpop.f32.mrb[0].mxu0
        %v585 = vadd.f32 0.0, %v584
        %v586 = vpop.f32.mrb[0].mxu0
        %587 = vmatprep.mubr.f32.mxu0 0.0
        %588 = vmatmul.mubr.f32.gmra.mrb[0].mxu0 %v458
        %v589 = vpop.f32.mrb[0].mxu0
        %v590 = vadd.f32 0.0, %v589
        %v591 = vpop.f32.mrb[0].mxu0
        %592 = vmatprep.mubr.f32.mxu0 0.0
        %593 = vmatmul.mubr.f32.gmra.mrb[0].mxu0 %v461
        %v594 = vpop.f32.mrb[0].mxu0
        %v595 = vadd.f32 0.0, %v594
        %v596 = vpop.f32.mrb[0].mxu0
        %597 = vmatprep.mubr.f32.mxu0 0.0
        %598 = vmatmul.mubr.f32.gmra.mrb[0].mxu0 %v464
        %v599 = vpop.f32.mrb[0].mxu0
        %v600 = vadd.f32 0.0, %v599
        %v601 = vpop.f32.mrb[0].mxu0
        %602 = vmatprep.mubr.f32.mxu0 0.0
        %603 = vmatmul.mubr.f32.gmra.mrb[0].mxu0 %v467
        %v604 = vpop.f32.mrb[0].mxu0
        %v605 = vadd.f32 0.0, %v604
        %v606 = vpop.f32.mrb[0].mxu0
        %607 = vmatprep.mubr.f32.mxu0 0.0
        %608 = vmatmul.mubr.f32.gmra.mrb[0].mxu0 %v470
        %v609 = vpop.f32.mrb[0].mxu0
        %v610 = vadd.f32 0.0, %v609
        %v611 = vpop.f32.mrb[0].mxu0
        %612 = vmatprep.mubr.f32.mxu0 0.0
        %613 = vmatmul.mubr.f32.gmra.mrb[0].mxu0 %v473
        %v614 = vpop.f32.mrb[0].mxu0
        %v615 = vadd.f32 0.0, %v614
        %v616 = vpop.f32.mrb[0].mxu0
        %617 = vmatprep.mubr.f32.mxu0 0.0
        %618 = vmatmul.mubr.f32.gmra.mrb[0].mxu0 %v476
        %v619 = vpop.f32.mrb[0].mxu0
        %v620 = vadd.f32 0.0, %v619
        %v621 = vpop.f32.mrb[0].mxu0
        %622 = vdwg.mxu0
        %v623 = vld [vmem:[#allocation2] sm:$0xff]
        %v624 = vld [vmem:[#allocation2 + $0x8] sm:$0xff]
        %v625 = vld [vmem:[#allocation2 + $0x10] sm:$0xff]
        %v626 = vld [vmem:[#allocation2 + $0x18] sm:$0xff]
        %v627 = vld [vmem:[#allocation2 + $0x20] sm:$0xff]
        %v628 = vld [vmem:[#allocation2 + $0x28] sm:$0xff]
        %v629 = vld [vmem:[#allocation2 + $0x30] sm:$0xff]
        %v630 = vld [vmem:[#allocation2 + $0x38] sm:$0xff]
        %v631 = vld [vmem:[#allocation2 + $0x40] sm:$0xff]
        %v632 = vld [vmem:[#allocation2 + $0x48] sm:$0xff]
        %v633 = vld [vmem:[#allocation2 + $0x50] sm:$0xff]
        %v634 = vld [vmem:[#allocation2 + $0x58] sm:$0xff]
        %v635 = vld [vmem:[#allocation2 + $0x60] sm:$0xff]
        %v636 = vld [vmem:[#allocation2 + $0x68] sm:$0xff]
        %v637 = vld [vmem:[#allocation2 + $0x70] sm:$0xff]
        %v638 = vld [vmem:[#allocation2 + $0x78] sm:$0xff]
        %v639 = vld [vmem:[%s321] sm:$0xf]
        %v640 = vld [vmem:[%s321 + $0x4] sm:$0xf]
        %v641 = vld [vmem:[%s321 + $0x8] sm:$0xf]
        %v642 = vld [vmem:[%s321 + $0xc] sm:$0xf]
        %v643 = vld [vmem:[%s321 + $0x10] sm:$0xf]
        %v644 = vld [vmem:[%s321 + $0x14] sm:$0xf]
        %v645 = vld [vmem:[%s321 + $0x18] sm:$0xf]
        %v646 = vld [vmem:[%s321 + $0x1c] sm:$0xf]
        %v647 = vld [vmem:[%s321 + $0x20] sm:$0xf]
        %v648 = vld [vmem:[%s321 + $0x24] sm:$0xf]
        %v649 = vld [vmem:[%s321 + $0x28] sm:$0xf]
        %v650 = vld [vmem:[%s321 + $0x2c] sm:$0xf]
        %v651 = vld [vmem:[%s321 + $0x30] sm:$0xf]
        %v652 = vld [vmem:[%s321 + $0x34] sm:$0xf]
        %v653 = vld [vmem:[%s321 + $0x38] sm:$0xf]
        %v654 = vld [vmem:[%s321 + $0x3c] sm:$0xf]
        %v655 = vpack.c.bf16 %v550, %v545
        %v656 = vpack.c.bf16 %v560, %v555
        %v657 = vpack.c.bf16 %v570, %v565
        %v658 = vpack.c.bf16 %v580, %v575
        %v659 = vpack.c.bf16 %v590, %v585
        %v660 = vpack.c.bf16 %v600, %v595
        %v661 = vpack.c.bf16 %v610, %v605
        %v662 = vpack.c.bf16 %v620, %v615
        %v679 = vunpack.c.l.b16 %v639
        %v680 = vunpack.c.l.b16 %v640
        %v681 = vunpack.c.l.b16 %v641
        %v682 = vunpack.c.l.b16 %v642
        %v683 = vunpack.c.l.b16 %v643
        %v684 = vunpack.c.l.b16 %v644
        %v685 = vunpack.c.l.b16 %v645
        %v686 = vunpack.c.l.b16 %v646
        %v687 = vunpack.c.l.b16 %v647
        %v688 = vunpack.c.l.b16 %v648
        %v689 = vunpack.c.l.b16 %v649
        %v690 = vunpack.c.l.b16 %v650
        %v691 = vunpack.c.l.b16 %v651
        %v692 = vunpack.c.l.b16 %v652
        %v693 = vunpack.c.l.b16 %v653
        %v694 = vunpack.c.l.b16 %v654
        %v695 = vpack.c.b16 %v680, %v679
        %v696 = vpack.c.b16 %v682, %v681
        %v697 = vpack.c.b16 %v684, %v683
        %v698 = vpack.c.b16 %v686, %v685
        %v699 = vpack.c.b16 %v688, %v687
        %v700 = vpack.c.b16 %v690, %v689
        %v701 = vpack.c.b16 %v692, %v691
        %v702 = vpack.c.b16 %v694, %v693
        %711 = vmatprep.subr.bf16.mxu0 0
        %712 = vmatpush1.bf16.msra.mxu0 %v655
        %713 = vmatprep.subr.bf16.mxu0 0
        %714 = vmatpush1.bf16.msra.mxu0 %v656
        %715 = vmatprep.subr.bf16.mxu0 0
        %716 = vmatpush1.bf16.msra.mxu0 %v657
        %717 = vmatprep.subr.bf16.mxu0 0
        %718 = vmatpush1.bf16.msra.mxu0 %v658
        %719 = vmatprep.subr.bf16.mxu0 0
        %720 = vmatpush1.bf16.msra.mxu0 %v659
        %721 = vmatprep.subr.bf16.mxu0 0
        %722 = vmatpush1.bf16.msra.mxu0 %v660
        %723 = vmatprep.subr.bf16.mxu0 0
        %724 = vmatpush1.bf16.msra.mxu0 %v661
        %725 = vmatprep.subr.bf16.mxu0 0
        %726 = vmatpush1.bf16.msra.mxu0 %v662
        %727 = vmatprep.subr.bf16.mxu0 0
        %728 = vmatpush1.bf16.msra.mxu0 0
        %729 = vmatprep.subr.bf16.mxu0 0
        %730 = vmatpush1.bf16.msra.mxu0 0
        %731 = vmatprep.subr.bf16.mxu0 0
        %732 = vmatpush1.bf16.msra.mxu0 0
        %733 = vmatprep.subr.bf16.mxu0 0
        %734 = vmatpush1.bf16.msra.mxu0 0
        %735 = vmatprep.subr.bf16.mxu0 0
        %736 = vmatpush1.bf16.msra.mxu0 0
        %737 = vmatprep.subr.bf16.mxu0 0
        %738 = vmatpush1.bf16.msra.mxu0 0
        %739 = vmatprep.subr.bf16.mxu0 0
        %740 = vmatpush1.bf16.msra.mxu0 0
        %741 = vmatprep.subr.bf16.mxu0 0
        %742 = vmatpush1.bf16.msra.mxu0 0
        %743 = vmatprep.mubr.bf16.mxu0 0
        %744 = vmatmul.mubr.bf16.gmra.mrb[0].mxu0 %v695
        %v745 = vpop.f32.mrb[0].mxu0
        %v746 = vadd.f32 0.0, %v745
        %v747 = vpop.f32.mrb[0].mxu0
        %v748 = vpop.f32.mrb[0].mxu0
        %v749 = vadd.f32 0.0, %v748
        %v750 = vpop.f32.mrb[0].mxu0
        %751 = vmatprep.mubr.bf16.mxu0 0
        %752 = vmatmul.mubr.bf16.gmra.mrb[0].mxu0 %v696
        %v753 = vpop.f32.mrb[0].mxu0
        %v754 = vadd.f32 0.0, %v753
        %v755 = vpop.f32.mrb[0].mxu0
        %v756 = vpop.f32.mrb[0].mxu0
        %v757 = vadd.f32 0.0, %v756
        %v758 = vpop.f32.mrb[0].mxu0
        %759 = vmatprep.mubr.bf16.mxu0 0
        %760 = vmatmul.mubr.bf16.gmra.mrb[0].mxu0 %v697
        %v761 = vpop.f32.mrb[0].mxu0
        %v762 = vadd.f32 0.0, %v761
        %v763 = vpop.f32.mrb[0].mxu0
        %v764 = vpop.f32.mrb[0].mxu0
        %v765 = vadd.f32 0.0, %v764
        %v766 = vpop.f32.mrb[0].mxu0
        %767 = vmatprep.mubr.bf16.mxu0 0
        %768 = vmatmul.mubr.bf16.gmra.mrb[0].mxu0 %v698
        %v769 = vpop.f32.mrb[0].mxu0
        %v770 = vadd.f32 0.0, %v769
        %v771 = vpop.f32.mrb[0].mxu0
        %v772 = vpop.f32.mrb[0].mxu0
        %v773 = vadd.f32 0.0, %v772
        %v774 = vpop.f32.mrb[0].mxu0
        %775 = vmatprep.mubr.bf16.mxu0 0
        %776 = vmatmul.mubr.bf16.gmra.mrb[0].mxu0 %v699
        %v777 = vpop.f32.mrb[0].mxu0
        %v778 = vadd.f32 0.0, %v777
        %v779 = vpop.f32.mrb[0].mxu0
        %v780 = vpop.f32.mrb[0].mxu0
        %v781 = vadd.f32 0.0, %v780
        %v782 = vpop.f32.mrb[0].mxu0
        %783 = vmatprep.mubr.bf16.mxu0 0
        %784 = vmatmul.mubr.bf16.gmra.mrb[0].mxu0 %v700
        %v785 = vpop.f32.mrb[0].mxu0
        %v786 = vadd.f32 0.0, %v785
        %v787 = vpop.f32.mrb[0].mxu0
        %v788 = vpop.f32.mrb[0].mxu0
        %v789 = vadd.f32 0.0, %v788
        %v790 = vpop.f32.mrb[0].mxu0
        %791 = vmatprep.mubr.bf16.mxu0 0
        %792 = vmatmul.mubr.bf16.gmra.mrb[0].mxu0 %v701
        %v793 = vpop.f32.mrb[0].mxu0
        %v794 = vadd.f32 0.0, %v793
        %v795 = vpop.f32.mrb[0].mxu0
        %v796 = vpop.f32.mrb[0].mxu0
        %v797 = vadd.f32 0.0, %v796
        %v798 = vpop.f32.mrb[0].mxu0
        %799 = vmatprep.mubr.bf16.mxu0 0
        %800 = vmatmul.mubr.bf16.gmra.mrb[0].mxu0 %v702
        %v801 = vpop.f32.mrb[0].mxu0
        %v802 = vadd.f32 0.0, %v801
        %v803 = vpop.f32.mrb[0].mxu0
        %v804 = vpop.f32.mrb[0].mxu0
        %v805 = vadd.f32 0.0, %v804
        %v806 = vpop.f32.mrb[0].mxu0
        %807 = vdwg.mxu0
        %v808 = vadd.f32 %v623, %v746
        %v809 = vadd.f32 %v624, %v749
        %v810 = vadd.f32 %v625, %v754
        %v811 = vadd.f32 %v626, %v757
        %v812 = vadd.f32 %v627, %v762
        %v813 = vadd.f32 %v628, %v765
        %v814 = vadd.f32 %v629, %v770
        %v815 = vadd.f32 %v630, %v773
        %v816 = vadd.f32 %v631, %v778
        %v817 = vadd.f32 %v632, %v781
        %v818 = vadd.f32 %v633, %v786
        %v819 = vadd.f32 %v634, %v789
        %v820 = vadd.f32 %v635, %v794
        %v821 = vadd.f32 %v636, %v797
        %v822 = vadd.f32 %v637, %v802
        %v823 = vadd.f32 %v638, %v805
        %824 = vst.msk [vmem:[#allocation2] sm:$0xff] %vm429, %v808
        %825 = vst.msk [vmem:[#allocation2 + $0x8] sm:$0xff] %vm429, %v809
        %826 = vst.msk [vmem:[#allocation2 + $0x10] sm:$0xff] %vm429, %v810
        %827 = vst.msk [vmem:[#allocation2 + $0x18] sm:$0xff] %vm429, %v811
        %828 = vst.msk [vmem:[#allocation2 + $0x20] sm:$0xff] %vm429, %v812
        %829 = vst.msk [vmem:[#allocation2 + $0x28] sm:$0xff] %vm429, %v813
        %830 = vst.msk [vmem:[#allocation2 + $0x30] sm:$0xff] %vm429, %v814
        %831 = vst.msk [vmem:[#allocation2 + $0x38] sm:$0xff] %vm429, %v815
        %832 = vst.msk [vmem:[#allocation2 + $0x40] sm:$0xff] %vm429, %v816
        %833 = vst.msk [vmem:[#allocation2 + $0x48] sm:$0xff] %vm429, %v817
        %834 = vst.msk [vmem:[#allocation2 + $0x50] sm:$0xff] %vm429, %v818
        %835 = vst.msk [vmem:[#allocation2 + $0x58] sm:$0xff] %vm429, %v819
        %836 = vst.msk [vmem:[#allocation2 + $0x60] sm:$0xff] %vm429, %v820
        %837 = vst.msk [vmem:[#allocation2 + $0x68] sm:$0xff] %vm429, %v821
        %838 = vst.msk [vmem:[#allocation2 + $0x70] sm:$0xff] %vm429, %v822
        %839 = vst.msk [vmem:[#allocation2 + $0x78] sm:$0xff] %vm429, %v823
        %p840 = scmp.eq.s32.totalorder %s33, 1
        // Predicated region
        $region73: #{tpu_custom_call.1} parent=43 // pred_check
          %p841 = pneg %p840
        $region74: #{tpu_custom_call.1} parent=43 // pred_check_branch
          %843 = sbr.rel (%p841) target = $region76
        $region75: #{tpu_custom_call.1} parent=43 // pred_region
          %v844 = vld [vmem:[#allocation2] sm:$0xff]
          %v845 = vld [vmem:[#allocation2 + $0x8] sm:$0xff]
          %v846 = vld [vmem:[#allocation2 + $0x10] sm:$0xff]
          %v847 = vld [vmem:[#allocation2 + $0x18] sm:$0xff]
          %v848 = vld [vmem:[#allocation2 + $0x20] sm:$0xff]
          %v849 = vld [vmem:[#allocation2 + $0x28] sm:$0xff]
          %v850 = vld [vmem:[#allocation2 + $0x30] sm:$0xff]
          %v851 = vld [vmem:[#allocation2 + $0x38] sm:$0xff]
          %v852 = vld [vmem:[#allocation2 + $0x40] sm:$0xff]
          %v853 = vld [vmem:[#allocation2 + $0x48] sm:$0xff]
          %v854 = vld [vmem:[#allocation2 + $0x50] sm:$0xff]
          %v855 = vld [vmem:[#allocation2 + $0x58] sm:$0xff]
          %v856 = vld [vmem:[#allocation2 + $0x60] sm:$0xff]
          %v857 = vld [vmem:[#allocation2 + $0x68] sm:$0xff]
          %v858 = vld [vmem:[#allocation2 + $0x70] sm:$0xff]
          %v859 = vld [vmem:[#allocation2 + $0x78] sm:$0xff]
          %v860 = vld [vmem:[#allocation9] sm:$0x1]
          %v862 = vlaneseq
          %v863 = vshrl.u32 %v862, 7
          %v864 = vsub.s32 0, %v863
          %v865 = vrot.slane %v860, %v864
          %v867 = vadd.f32 %v844, %v865
          %v868 = vadd.f32 %v845, %v865
          %v869 = vadd.f32 %v846, %v865
          %v870 = vadd.f32 %v847, %v865
          %v871 = vadd.f32 %v848, %v865
          %v872 = vadd.f32 %v849, %v865
          %v873 = vadd.f32 %v850, %v865
          %v874 = vadd.f32 %v851, %v865
          %v875 = vadd.f32 %v852, %v865
          %v876 = vadd.f32 %v853, %v865
          %v877 = vadd.f32 %v854, %v865
          %v878 = vadd.f32 %v855, %v865
          %v879 = vadd.f32 %v856, %v865
          %v880 = vadd.f32 %v857, %v865
          %v881 = vadd.f32 %v858, %v865
          %v882 = vadd.f32 %v859, %v865
          %v883 = vld [vmem:[#allocation11] sm:$0xff]
          %v884 = vld [vmem:[#allocation11 + $0x8] sm:$0xff]
          %v885 = vld [vmem:[#allocation11 + $0x10] sm:$0xff]
          %v886 = vld [vmem:[#allocation11 + $0x18] sm:$0xff]
          %v887 = vld [vmem:[#allocation11 + $0x20] sm:$0xff]
          %v888 = vld [vmem:[#allocation11 + $0x28] sm:$0xff]
          %v889 = vld [vmem:[#allocation11 + $0x30] sm:$0xff]
          %v890 = vld [vmem:[#allocation11 + $0x38] sm:$0xff]
          %v891 = vld [vmem:[#allocation12] sm:$0x1]
          %v893 = vlaneseq
          %v894 = vshrl.u32 %v893, 7
          %v895 = vsub.s32 0, %v894
          %v896 = vrot.slane %v891, %v895
          %v899 = vsel %vm429, %v867, 0
          %v902 = vsel %vm429, %v868, 0
          %v905 = vsel %vm429, %v869, 0
          %v908 = vsel %vm429, %v870, 0
          %v911 = vsel %vm429, %v871, 0
          %v914 = vsel %vm429, %v872, 0
          %v917 = vsel %vm429, %v873, 0
          %v920 = vsel %vm429, %v874, 0
          %v923 = vsel %vm429, %v875, 0
          %v926 = vsel %vm429, %v876, 0
          %v929 = vsel %vm429, %v877, 0
          %v932 = vsel %vm429, %v878, 0
          %v935 = vsel %vm429, %v879, 0
          %v938 = vsel %vm429, %v880, 0
          %v941 = vsel %vm429, %v881, 0
          %v944 = vsel %vm429, %v882, 0
          %946 = vmatprep.subr.mxu0 0.0
          %947 = vmatpush1.msra.mxu0 %v883
          %948 = vmatprep.subr.mxu0 0.0
          %949 = vmatpush1.msra.mxu0 %v884
          %950 = vmatprep.subr.mxu0 0.0
          %951 = vmatpush1.msra.mxu0 %v885
          %952 = vmatprep.subr.mxu0 0.0
          %953 = vmatpush1.msra.mxu0 %v886
          %954 = vmatprep.subr.mxu0 0.0
          %955 = vmatpush1.msra.mxu0 %v887
          %956 = vmatprep.subr.mxu0 0.0
          %957 = vmatpush1.msra.mxu0 %v888
          %958 = vmatprep.subr.mxu0 0.0
          %959 = vmatpush1.msra.mxu0 %v889
          %960 = vmatprep.subr.mxu0 0.0
          %961 = vmatpush1.msra.mxu0 %v890
          %962 = vmatprep.subr.mxu0 0.0
          %963 = vmatpush1.msra.mxu0 0.0
          %964 = vmatprep.subr.mxu0 0.0
          %965 = vmatpush1.msra.mxu0 0.0
          %966 = vmatprep.subr.mxu0 0.0
          %967 = vmatpush1.msra.mxu0 0.0
          %968 = vmatprep.subr.mxu0 0.0
          %969 = vmatpush1.msra.mxu0 0.0
          %970 = vmatprep.subr.mxu0 0.0
          %971 = vmatpush1.msra.mxu0 0.0
          %972 = vmatprep.subr.mxu0 0.0
          %973 = vmatpush1.msra.mxu0 0.0
          %974 = vmatprep.subr.mxu0 0.0
          %975 = vmatpush1.msra.mxu0 0.0
          %976 = vmatprep.subr.mxu0 0.0
          %977 = vmatpush1.msra.mxu0 0.0
          %978 = vmatprep.subr.mxu0 0.0
          %979 = vmatpush1.msra.mxu0 0.0
          %980 = vmatprep.subr.mxu0 0.0
          %981 = vmatpush1.msra.mxu0 0.0
          %982 = vmatprep.subr.mxu0 0.0
          %983 = vmatpush1.msra.mxu0 0.0
          %984 = vmatprep.subr.mxu0 0.0
          %985 = vmatpush1.msra.mxu0 0.0
          %986 = vmatprep.subr.mxu0 0.0
          %987 = vmatpush1.msra.mxu0 0.0
          %988 = vmatprep.subr.mxu0 0.0
          %989 = vmatpush1.msra.mxu0 0.0
          %990 = vmatprep.subr.mxu0 0.0
          %991 = vmatpush1.msra.mxu0 0.0
          %992 = vmatprep.subr.mxu0 0.0
          %993 = vmatpush1.msra.mxu0 0.0
          %994 = vmatprep.subr.mxu0 0.0
          %995 = vmatpush1.msra.mxu0 0.0
          %996 = vmatprep.subr.mxu0 0.0
          %997 = vmatpush1.msra.mxu0 0.0
          %998 = vmatprep.subr.mxu0 0.0
          %999 = vmatpush1.msra.mxu0 0.0
          %1000 = vmatprep.subr.mxu0 0.0
          %1001 = vmatpush1.msra.mxu0 0.0
          %1002 = vmatprep.subr.mxu0 0.0
          %1003 = vmatpush1.msra.mxu0 0.0
          %1004 = vmatprep.subr.mxu0 0.0
          %1005 = vmatpush1.msra.mxu0 0.0
          %1006 = vmatprep.subr.mxu0 0.0
          %1007 = vmatpush1.msra.mxu0 0.0
          %1008 = vmatprep.subr.mxu0 0.0
          %1009 = vmatpush1.msra.mxu0 0.0
          %1010 = vmatprep.mubr.f32.mxu0 0.0
          %1011 = vmatmul.mubr.f32.gmra.mrb[0].mxu0 %v899
          %v1012 = vpop.f32.mrb[0].mxu0
          %v1013 = vadd.f32 %v896, %v1012
          %v1014 = vpop.f32.mrb[0].mxu0
          %1015 = vmatprep.mubr.f32.mxu0 0.0
          %1016 = vmatmul.mubr.f32.gmra.mrb[0].mxu0 %v902
          %v1017 = vpop.f32.mrb[0].mxu0
          %v1018 = vadd.f32 %v896, %v1017
          %v1019 = vpop.f32.mrb[0].mxu0
          %1020 = vmatprep.mubr.f32.mxu0 0.0
          %1021 = vmatmul.mubr.f32.gmra.mrb[0].mxu0 %v905
          %v1022 = vpop.f32.mrb[0].mxu0
          %v1023 = vadd.f32 %v896, %v1022
          %v1024 = vpop.f32.mrb[0].mxu0
          %1025 = vmatprep.mubr.f32.mxu0 0.0
          %1026 = vmatmul.mubr.f32.gmra.mrb[0].mxu0 %v908
          %v1027 = vpop.f32.mrb[0].mxu0
          %v1028 = vadd.f32 %v896, %v1027
          %v1029 = vpop.f32.mrb[0].mxu0
          %1030 = vmatprep.mubr.f32.mxu0 0.0
          %1031 = vmatmul.mubr.f32.gmra.mrb[0].mxu0 %v911
          %v1032 = vpop.f32.mrb[0].mxu0
          %v1033 = vadd.f32 %v896, %v1032
          %v1034 = vpop.f32.mrb[0].mxu0
          %1035 = vmatprep.mubr.f32.mxu0 0.0
          %1036 = vmatmul.mubr.f32.gmra.mrb[0].mxu0 %v914
          %v1037 = vpop.f32.mrb[0].mxu0
          %v1038 = vadd.f32 %v896, %v1037
          %v1039 = vpop.f32.mrb[0].mxu0
          %1040 = vmatprep.mubr.f32.mxu0 0.0
          %1041 = vmatmul.mubr.f32.gmra.mrb[0].mxu0 %v917
          %v1042 = vpop.f32.mrb[0].mxu0
          %v1043 = vadd.f32 %v896, %v1042
          %v1044 = vpop.f32.mrb[0].mxu0
          %1045 = vmatprep.mubr.f32.mxu0 0.0
          %1046 = vmatmul.mubr.f32.gmra.mrb[0].mxu0 %v920
          %v1047 = vpop.f32.mrb[0].mxu0
          %v1048 = vadd.f32 %v896, %v1047
          %v1049 = vpop.f32.mrb[0].mxu0
          %1050 = vmatprep.mubr.f32.mxu0 0.0
          %1051 = vmatmul.mubr.f32.gmra.mrb[0].mxu0 %v923
          %v1052 = vpop.f32.mrb[0].mxu0
          %v1053 = vadd.f32 %v896, %v1052
          %v1054 = vpop.f32.mrb[0].mxu0
          %1055 = vmatprep.mubr.f32.mxu0 0.0
          %1056 = vmatmul.mubr.f32.gmra.mrb[0].mxu0 %v926
          %v1057 = vpop.f32.mrb[0].mxu0
          %v1058 = vadd.f32 %v896, %v1057
          %v1059 = vpop.f32.mrb[0].mxu0
          %1060 = vmatprep.mubr.f32.mxu0 0.0
          %1061 = vmatmul.mubr.f32.gmra.mrb[0].mxu0 %v929
          %v1062 = vpop.f32.mrb[0].mxu0
          %v1063 = vadd.f32 %v896, %v1062
          %v1064 = vpop.f32.mrb[0].mxu0
          %1065 = vmatprep.mubr.f32.mxu0 0.0
          %1066 = vmatmul.mubr.f32.gmra.mrb[0].mxu0 %v932
          %v1067 = vpop.f32.mrb[0].mxu0
          %v1068 = vadd.f32 %v896, %v1067
          %v1069 = vpop.f32.mrb[0].mxu0
          %1070 = vmatprep.mubr.f32.mxu0 0.0
          %1071 = vmatmul.mubr.f32.gmra.mrb[0].mxu0 %v935
          %v1072 = vpop.f32.mrb[0].mxu0
          %v1073 = vadd.f32 %v896, %v1072
          %v1074 = vpop.f32.mrb[0].mxu0
          %1075 = vmatprep.mubr.f32.mxu0 0.0
          %1076 = vmatmul.mubr.f32.gmra.mrb[0].mxu0 %v938
          %v1077 = vpop.f32.mrb[0].mxu0
          %v1078 = vadd.f32 %v896, %v1077
          %v1079 = vpop.f32.mrb[0].mxu0
          %1080 = vmatprep.mubr.f32.mxu0 0.0
          %1081 = vmatmul.mubr.f32.gmra.mrb[0].mxu0 %v941
          %v1082 = vpop.f32.mrb[0].mxu0
          %v1083 = vadd.f32 %v896, %v1082
          %v1084 = vpop.f32.mrb[0].mxu0
          %1085 = vmatprep.mubr.f32.mxu0 0.0
          %1086 = vmatmul.mubr.f32.gmra.mrb[0].mxu0 %v944
          %v1087 = vpop.f32.mrb[0].mxu0
          %v1088 = vadd.f32 %v896, %v1087
          %v1089 = vpop.f32.mrb[0].mxu0
          %1090 = vdwg.mxu0
          %1091 = vst [vmem:[%s379] sm:$0xff] %v1013
          %1092 = vst [vmem:[%s379 + $0x8] sm:$0xff] %v1018
          %1093 = vst [vmem:[%s379 + $0x10] sm:$0xff] %v1023
          %1094 = vst [vmem:[%s379 + $0x18] sm:$0xff] %v1028
          %1095 = vst [vmem:[%s379 + $0x20] sm:$0xff] %v1033
          %1096 = vst [vmem:[%s379 + $0x28] sm:$0xff] %v1038
          %1097 = vst [vmem:[%s379 + $0x30] sm:$0xff] %v1043
          %1098 = vst [vmem:[%s379 + $0x38] sm:$0xff] %v1048
          %1099 = vst [vmem:[%s379 + $0x40] sm:$0xff] %v1053
          %1100 = vst [vmem:[%s379 + $0x48] sm:$0xff] %v1058
          %1101 = vst [vmem:[%s379 + $0x50] sm:$0xff] %v1063
          %1102 = vst [vmem:[%s379 + $0x58] sm:$0xff] %v1068
          %1103 = vst [vmem:[%s379 + $0x60] sm:$0xff] %v1073
          %1104 = vst [vmem:[%s379 + $0x68] sm:$0xff] %v1078
          %1105 = vst [vmem:[%s379 + $0x70] sm:$0xff] %v1083
          %1106 = vst [vmem:[%s379 + $0x78] sm:$0xff] %v1088
        $region76: #{tpu_custom_call.1} parent=43 // pred_fallthru
          _
        %s1107 = sand.u32 %s186, 1
        %s1108 = scalar_lea.sflag [#allocation5], %s1107
        %s1109 = sand.u32 %s186, 1
        %s1110 = smul.addr %s1109, 128
        %s1111 = scalar_lea.vmem [#allocation14], %s1110
        // Predicated region
        $region77: #{tpu_custom_call.1} parent=43 // pred_check
          %p1112 = pneg %p196
        $region78: #{tpu_custom_call.1} parent=43 // pred_check_branch
          %1114 = sbr.rel (%p1112) target = $region80
        $region79: #{tpu_custom_call.1} parent=43 // pred_region
          %s1115 = smul.u32 16, %s32
          %s1117 = ssub.s32 2048, 2048
          %1118 = vsyncadd %s1108, %s1117
          %s1119 = smul.addr %s1115, 128
          %s1120 = scalar_lea.hbm %s6, %s1119
          %s1121 = sshll.u32 %s1111, 4
          %s1122 = int_to_ptr.vmem [resolvable:$true] %s1121
          %1127 = dma.vmem_to_hbm [thread:$0]  %s1122, 2048, %s1120, %s1108, 128, 128, 8
        $region80: #{tpu_custom_call.1} parent=43 // pred_fallthru
          _
      $region44: #{tpu_custom_call.1} parent=5 // pred_fallthru
        _
      %p1128 = scmp.le.s32.totalorder 2, %s23
      // Predicated region
      $region81: #{tpu_custom_call.1} parent=5 // pred_check
        %p1129 = pneg %p1128
      $region82: #{tpu_custom_call.1} parent=5 // pred_check_branch
        %1131 = sbr.rel (%p1129) target = $region84
      $region83: #{tpu_custom_call.1} parent=5 // pred_region
        %s1132 = ssub.s32 %s23, 2
        // Predicated region
        $region85: #{tpu_custom_call.1} parent=83 // pred_check
          %p1133 = pneg %p202
        $region86: #{tpu_custom_call.1} parent=83 // pred_check_branch
          %1135 = sbr.rel (%p1133) target = $region88
        $region87: #{tpu_custom_call.1} parent=83 // pred_region
          %s1136 = sand.u32 %s187, 1
          %s1137 = scalar_lea.sflag [#allocation5], %s1136
          %s1138 = sand.u32 %s187, 1
          %s1139 = smul.addr %s1138, 128
          %s1140 = scalar_lea.vmem [#allocation14], %s1139
          %1141 = dma.done %s1137, 2048
        $region88: #{tpu_custom_call.1} parent=83 // pred_fallthru
          _
      $region84: #{tpu_custom_call.1} parent=5 // pred_fallthru
        _
    $region6: #{tpu_custom_call.1} parent=1 // loop_footer
      %s27 = sadd.s32 1, %s23
    $region7: #{tpu_custom_call.1} parent=1 // loop_footer_branch
      %22 = sbr.rel target = $region3
    $region8: #{tpu_custom_call.1} parent=1 // loop_exit
      _
    %1142 = vsyncpa [#allocation4], 1
    %s1143 = scalar_lea.sflag [#allocation4], 1
    %1144 = vsyncpa %s1143, 1
    %1145 = vsyncpa [#allocation7], 1
    %s1146 = scalar_lea.sflag [#allocation7], 1
    %1147 = vsyncpa %s1146, 1
    %1148 = vsyncpa [#allocation10], 1
    %1149 = vsyncpa [#allocation13], 1
    %1150 = vsyncpa [#allocation5], 1
    %s1151 = scalar_lea.sflag [#allocation5], 1
    %1152 = vsyncpa %s1151, 1

</llo_original>
